<compile_context>
chip_gen: v5e
topology: v5e:2x2
jax: 0.10.0
libtpu: 0.0.40
codegen_flags: <defaults>
</compile_context>

<pallas_src>
import functools
import math

import jax
import jax.numpy as jnp
from jax.experimental import pallas as pl
from jax.experimental.pallas import tpu as pltpu


# ----------------------------- Pallas kernels -----------------------------

def _i3d_head_kernel(x_ref, w_ref, b_ref, o_ref, *, inv_s):
    """Single-pass variant: one grid axis over batch rows.

    x_ref : (G, C, S)   input features, S = D*H*W (input dtype, upcast here)
    w_ref : (C, Kp)     fc_cls weight stored (in, out), zero-padded to Kp
    b_ref : (1, Kp)     fc_cls bias, zero-padded, f32
    o_ref : (G, Kp)     class scores
    """
    x = x_ref[...].astype(jnp.float32)                      # (G, C, S)
    # AdaptiveAvgPool3d((1,1,1)) == global mean over spatial/temporal axis.
    pooled = jnp.sum(x, axis=-1) * inv_s                    # (G, C) f32
    # TODO(synk): nn.Dropout is stochastic in training; inference semantics
    # (identity) are implemented here.
    acc = jnp.dot(pooled, w_ref[...].astype(jnp.float32),
                  preferred_element_type=jnp.float32)       # (G, Kp) f32
    o_ref[...] = (acc + b_ref[...]).astype(o_ref.dtype)


def _i3d_head_kernel_split(x_ref, w_ref, b_ref, o_ref, acc_ref, *, inv_s):
    """S-split variant: grid = (batch blocks, S blocks ["arbitrary"]).

    acc_ref : (G, C) f32 VMEM scratch accumulating the spatial sum.
    """
    s = pl.program_id(1)

    @pl.when(s == 0)
    def _():
        acc_ref[...] = jnp.zeros_like(acc_ref)

    acc_ref[...] += jnp.sum(x_ref[...].astype(jnp.float32), axis=-1)

    @pl.when(s == pl.num_programs(1) - 1)
    def _():
        pooled = acc_ref[...] * inv_s                        # (G, C) f32
        out = jnp.dot(pooled, w_ref[...].astype(jnp.float32),
                      preferred_element_type=jnp.float32)    # (G, Kp) f32
        o_ref[...] = (out + b_ref[...]).astype(o_ref.dtype)


# ----------------------------- Tiling helpers -----------------------------

def _round_up(a, b):
    return (a + b - 1) // b * b


def _vmem_capacity_bytes():
    """Physical VMEM per TensorCore; conservative fallback if query fails."""
    try:
        cap = int(pltpu.get_tpu_info().vmem_capacity_bytes)
        if cap > 0:
            return cap
    except Exception:
        pass
    return 64 << 20  # v7x-sized fallback: safe on every generation


def _choose_tiling(Np, C, S, Kp, x_itemsize, w_itemsize, budget):
    """Pick (G, Ts): rows per block and spatial tile, maximizing G first."""
    resident = C * Kp * w_itemsize + Kp * 4      # weight + bias (single copy)
    headroom = 2 << 20                            # compiler-internal scratch
    avail = budget - resident - headroom

    def block_bytes(g, t):
        return (2 * g * C * t * x_itemsize        # double-buffered activations
                + 2 * g * Kp * 4                  # double-buffered output
                + g * C * 4)                      # pooled accumulator scratch

    # Candidate G: multiples of 8 dividing Np.  Keep grid >= 2 when possible
    # so the "parallel" batch axis can be split across both v7x TensorCores.
    cands = [g for g in range(8, Np + 1, 8) if Np % g == 0]
    if not cands:
        cands = [Np]
    if Np >= 16:
        two_core = [g for g in cands if Np // g >= 2]
        if two_core:
            cands = two_core
    cands.sort(reverse=True)

    # Prefer no S split: largest G whose full-S block fits.
    for g in cands:
        if block_bytes(g, S) <= avail:
            return g, S

    # S split: keep G large, shrink the spatial tile (must be multiple of 128
    # dividing S to satisfy the lane constraint).
    ts_cands = sorted((t for t in range(128, S, 128) if S % t == 0),
                      reverse=True)
    for g in cands:
        for t in ts_cands:
            if block_bytes(g, t) <= avail:
                return g, t

    # Last resort: smallest G, smallest legal tile (may exceed the heuristic
    # budget; vmem_limit is sized from the final choice below).
    return cands[-1], (ts_cands[-1] if ts_cands else S)


# ----------------------------- Wrapper -----------------------------

def i3d_head_forward(x, fc_w, fc_b):
    """x: (N, C, D, H, W);  fc_w: (C, K) (== torch weight.T);  fc_b: (K,)."""
    N, C = x.shape[0], x.shape[1]
    S = int(math.prod(x.shape[2:]))
    K = fc_w.shape[1]

    out_dtype = jnp.promote_types(x.dtype, fc_w.dtype)

    # ---- layout plumbing: lane-dense K, sublane-friendly N ----
    Kp = max(128, _round_up(K, 128))
    Np = _round_up(N, 8)

    x3 = x.reshape(N, C, S)                      # free reshape; keep producer dtype
    if Np != N:
        x3 = jnp.pad(x3, ((0, Np - N), (0, 0), (0, 0)))
    w_p = fc_w if Kp == K else jnp.pad(fc_w, ((0, 0), (0, Kp - K)))
    b_p = jnp.pad(fc_b, (0, Kp - K)).reshape(1, Kp).astype(jnp.float32)

    x_itemsize = x3.dtype.itemsize
    w_itemsize = w_p.dtype.itemsize

    # ---- per-generation VMEM budget (leave ~25% headroom) ----
    vmem_cap = _vmem_capacity_bytes()
    budget = int(vmem_cap * 0.75)

    G, Ts = _choose_tiling(Np, C, S, Kp, x_itemsize, w_itemsize, budget)

    computed = (2 * G * C * Ts * x_itemsize
                + C * Kp * w_itemsize + Kp * 4
                + 2 * G * Kp * 4
                + G * C * 4)
    vmem_limit = computed + (4 << 20)
    vmem_limit = max(vmem_limit, 16 << 20)
    vmem_limit = min(vmem_limit, max(16 << 20, vmem_cap - (8 << 20)))

    cost = pl.CostEstimate(
        flops=Np * C * S + 2 * Np * C * Kp,
        transcendentals=0,
        bytes_accessed=(Np * C * S * x_itemsize + C * Kp * w_itemsize
                        + Kp * 4 + Np * Kp * 4))

    inv_s = 1.0 / S

    if Ts == S:
        # Single grid axis over batch rows.
        out = pl.pallas_call(
            functools.partial(_i3d_head_kernel, inv_s=inv_s),
            out_shape=jax.ShapeDtypeStruct((Np, Kp), out_dtype),
            grid=(Np // G,),
            in_specs=[
                pl.BlockSpec((G, C, S), lambda i: (i, 0, 0)),   # activations
                pl.BlockSpec((C, Kp), lambda i: (0, 0)),        # weight (resident)
                pl.BlockSpec((1, Kp), lambda i: (0, 0)),        # bias   (resident)
            ],
            out_specs=pl.BlockSpec((G, Kp), lambda i: (i, 0)),  # lane-dense scores
            compiler_params=pltpu.CompilerParams(
                dimension_semantics=("parallel",),
                vmem_limit_bytes=vmem_limit),
            cost_estimate=cost,
        )(x3, w_p, b_p)
    else:
        # Second grid axis over S (reduction, "arbitrary") with a pooled
        # accumulator scratch -- keeps G large for real I3D shapes.
        out = pl.pallas_call(
            functools.partial(_i3d_head_kernel_split, inv_s=inv_s),
            out_shape=jax.ShapeDtypeStruct((Np, Kp), out_dtype),
            grid=(Np // G, S // Ts),
            in_specs=[
                pl.BlockSpec((G, C, Ts), lambda i, s: (i, 0, s)),
                pl.BlockSpec((C, Kp), lambda i, s: (0, 0)),
                pl.BlockSpec((1, Kp), lambda i, s: (0, 0)),
            ],
            out_specs=pl.BlockSpec((G, Kp), lambda i, s: (i, 0)),
            scratch_shapes=[pltpu.VMEM((G, C), jnp.float32)],
            compiler_params=pltpu.CompilerParams(
                dimension_semantics=("parallel", "arbitrary"),
                vmem_limit_bytes=vmem_limit),
            cost_estimate=cost,
        )(x3, w_p, b_p)

    return out[:N, :K]


# ----------------------------- Pure-JAX reference -----------------------------

def i3d_head_reference(x, fc_w, fc_b):
    N, C = x.shape[0], x.shape[1]
    pooled = x.reshape(N, C, -1).astype(jnp.float32).mean(-1)  # AdaptiveAvgPool3d
    # dropout == identity at inference
    return pooled @ fc_w.astype(jnp.float32) + fc_b.astype(jnp.float32)


# ----------------------------- Main -----------------------------

if __name__ == "__main__":
    # Small but TPU-shaped config: 16 clips, 64-channel features over a
    # (4, 8, 8) spatio-temporal grid, 32 classes.
    N, C, D, H, W = 16, 64, 4, 8, 8
    num_classes = 32
    init_std = 0.01

    key = jax.random.PRNGKey(0)
    kx, kw, kb = jax.random.split(key, 3)
    x = jax.random.normal(kx, (N, C, D, H, W), jnp.float32)
    # torch stores Linear weight as (out, in); we keep (in, out) so y = x @ W + b.
    fc_w = jax.random.normal(kw, (C, num_classes), jnp.float32) * init_std
    fc_b = jax.random.normal(kb, (num_classes,), jnp.float32) * init_std

    y = i3d_head_forward(x, fc_w, fc_b)
    y = jax.block_until_ready(y)

    y_ref = i3d_head_reference(x, fc_w, fc_b)
    err = float(jnp.max(jnp.abs(y - y_ref)))
    assert y.shape == (N, num_classes)
    # Full-f32 matmul now -> tight tolerance.
    assert jnp.allclose(y, y_ref, rtol=1e-4, atol=1e-5), f"max abs err {err}"

    print("KERNEL_OK")
</pallas_src>

<mosaic_0001>
module attributes {stable_mosaic.version = 11 : i64} {
  func.func @_i3d_head_kernel(%arg0: i32, %arg1: memref<8x64x256xf32, #tpu.memory_space<vmem>>, %arg2: memref<64x128xf32, #tpu.memory_space<vmem>>, %arg3: memref<1x128xf32, #tpu.memory_space<vmem>>, %arg4: memref<8x128xf32, #tpu.memory_space<vmem>>) attributes {dimension_semantics = [#tpu.dimension_semantics<parallel>], iteration_bounds = array<i64: 2>, scalar_prefetch = 0 : i64, scratch_operands = 0 : i64, tpu.core_type = #tpu.core_type<tc>, window_params = [{transform_indices = @transform_0, window_bounds = array<i64: 8, 64, 256>}, {pipeline_mode = #tpu.pipeline_mode<synchronous>, transform_indices = @transform_1, window_bounds = array<i64: 64, 128>}, {pipeline_mode = #tpu.pipeline_mode<synchronous>, transform_indices = @transform_2, window_bounds = array<i64: 1, 128>}, {transform_indices = @transform_3, window_bounds = array<i64: 8, 128>}]} {
    %c0 = arith.constant 0 : index
    %c0_0 = arith.constant 0 : index
    %c0_1 = arith.constant 0 : index
    %0 = vector.load %arg1[%c0, %c0_0, %c0_1] : memref<8x64x256xf32, #tpu.memory_space<vmem>>, vector<8x64x256xf32>
    %cst = arith.constant dense<0.000000e+00> : vector<8x64xf32>
    %1 = vector.multi_reduction <add>, %0, %cst [2] : vector<8x64x256xf32> to vector<8x64xf32>
    %cst_2 = arith.constant 3.906250e-03 : f32
    %2 = vector.broadcast %cst_2 : f32 to vector<8x64xf32>
    %3 = arith.mulf %1, %2 : vector<8x64xf32>
    %c0_3 = arith.constant 0 : index
    %c0_4 = arith.constant 0 : index
    %4 = vector.load %arg2[%c0_3, %c0_4] : memref<64x128xf32, #tpu.memory_space<vmem>>, vector<64x128xf32>
    %cst_5 = arith.constant dense<0.000000e+00> : vector<8x128xf32>
    %5 = tpu.matmul %3, %4, %cst_5 {dimension_numbers = #tpu.dot_dimension_numbers<[1], [0], [0], [1], [0, 0, 1, 1], [], []>} : vector<8x64xf32>, vector<64x128xf32>, vector<8x128xf32> -> vector<8x128xf32>
    %c0_6 = arith.constant 0 : index
    %c0_7 = arith.constant 0 : index
    %6 = vector.load %arg3[%c0_6, %c0_7] : memref<1x128xf32, #tpu.memory_space<vmem>>, vector<1x128xf32>
    %7 = vector.broadcast %6 : vector<1x128xf32> to vector<8x128xf32>
    %8 = arith.addf %5, %7 : vector<8x128xf32>
    %c0_8 = arith.constant 0 : index
    %c0_9 = arith.constant 0 : index
    %9 = vector.load %arg4[%c0_8, %c0_9] : memref<8x128xf32, #tpu.memory_space<vmem>>, vector<8x128xf32>
    tpu.vector_store %arg4[%c0_8, %c0_9], %8 {strides = array<i32>} : memref<8x128xf32, #tpu.memory_space<vmem>>, vector<8x128xf32>,
    return
  }
  func.func @transform_0(%arg0: i32) -> (i32, i32, i32) {
    %c0_i32 = arith.constant 0 : i32
    %c0_i32_0 = arith.constant 0 : i32
    %c0_i32_1 = arith.constant 0 : i32
    return %arg0, %c0_i32, %c0_i32_0 : i32, i32, i32
  }
  func.func @transform_1(%arg0: i32) -> (i32, i32) {
    %c0_i32 = arith.constant 0 : i32
    %c0_i32_0 = arith.constant 0 : i32
    %c0_i32_1 = arith.constant 0 : i32
    return %c0_i32, %c0_i32_0 : i32, i32
  }
  func.func @transform_2(%arg0: i32) -> (i32, i32) {
    %c0_i32 = arith.constant 0 : i32
    %c0_i32_0 = arith.constant 0 : i32
    %c0_i32_1 = arith.constant 0 : i32
    return %c0_i32, %c0_i32_0 : i32, i32
  }
  func.func @transform_3(%arg0: i32) -> (i32, i32) {
    %c0_i32 = arith.constant 0 : i32
    %c0_i32_0 = arith.constant 0 : i32
    return %arg0, %c0_i32 : i32, i32
  }
}

</mosaic_0001>

<llo_original>
// kernel: tpu_custom_call.1
$region0: #{tpu_custom_call.1}
  #allocation0 [shape = 'u32[]', space=smem, size = 0x4, offset = 0x4, fixed_abs, tag = 'smem constant byte address 0x4 - core index']
  #allocation1 [shape = 'u32[72,128]{1,0:T(1,128)}', space=vmem, size = 0x9000, scoped, tag = 'internal scratch']
  %s0 = inlined_call_operand.hbm [shape: f32[16,64,256], index: 0, kind: input, shape index: {}]
  %s1 = inlined_call_operand.hbm [shape: f32[64,128], index: 1, kind: input, shape index: {}]
  %s2 = inlined_call_operand.vmem [shape: f32[1,128], index: 2, kind: input, shape index: {}]
  %s3 = inlined_call_operand.hbm [shape: f32[16,128], index: 3, kind: output, shape index: {}]
  %s4 = sld [smem:[#allocation0]]
  $region53: #{tpu_custom_call.1} parent=0
    _
  %s6 = ssub.s32 1, %s4
  %s7 = scalar_select 0, %s6, %s4
  $region1: #{tpu_custom_call.1} parent=0
    #allocation2 [shape = 'u8[1048576]{0}', space=vmem, size = 0x100000, scoped, tag = 'input window, operand 0']
    #allocation3 [shape = 's32[2]{0}', space=sflag, size = 0x8, scoped, tag = 'scoped memory for tpu_custom_call.1']
    #allocation4 [shape = 's32[2]{0}', space=sflag, size = 0x8, scoped, tag = 'scoped memory for tpu_custom_call.1']
    #allocation5 [shape = 'u8[32768]{0}', space=vmem, size = 0x8000, scoped, tag = 'input window, operand 1, single buffered']
    #allocation6 [shape = 's32[1]{0}', space=sflag, size = 0x4, scoped, tag = 'scoped memory for tpu_custom_call.1']
    #allocation7 [shape = 'u8[8192]{0}', space=vmem, size = 0x2000, scoped, tag = 'output window, operand 0']
    %8 = vsyncpa [#allocation3], 0
    %s9 = scalar_lea.sflag [#allocation3], 1
    %10 = vsyncpa %s9, 0
    %11 = vsyncpa [#allocation6], 0
    %12 = vsyncpa [#allocation4], 0
    %s13 = scalar_lea.sflag [#allocation4], 1
    %14 = vsyncpa %s13, 0
    loop: start=0, step=1, limit=4
    $region2: #{tpu_custom_call.1} parent=1 // loop_pre_header
      _
    $region3: #{tpu_custom_call.1} parent=1 // loop_header
      %s16 = sphi 0, %s20
      %p17 = scmp.ge.s32.totalorder %s16, 4
      %s26 = sphi 0, %s28
      %s29 = sphi 0, %s26
      %s30 = sphi 0, %s29
      %s46 = sphi 0, %s30
      %s50 = sphi 0, %s50
      %s52 = sphi 0, %s50
      %s53 = sphi 0, %s52
      %s67 = sphi 0, %s53
      %s71 = sphi 0, %s71
      %s73 = sphi 0, %s71
      %s74 = sphi 0, %s73
      %s88 = sphi 0, %s74
      %s94 = sphi 0, %s96
      %s97 = sphi 0, %s94
      %s98 = sphi 0, %s97
      %s114 = sphi 0, %s98
    $region4: #{tpu_custom_call.1} parent=1 // loop_header_branch
      %19 = sbr.rel (%p17) target = $region8
    $region5: #{tpu_custom_call.1} parent=1 // loop_body
      %s21 = ssub.s32 %s16, 1
      %s22 = ssub.s32 %s16, 2
      %s23 = sadd.s32 %s16, 1
      %s24 = ssub.s32 %s16, %s23
      %p25 = scmp.eq.s32.totalorder %s24, 0
      %s27 = sadd.s32 %s26, 1
      %s28 = scalar_select %p25, %s26, %s27
      %p31 = pneg %p25
      %p32 = scmp.eq.s32.totalorder %s16, 1
      %p33 = por %p31, %p32
      %p34 = scmp.ne.s32.totalorder %s26, %s29
      %p35 = scmp.eq.s32.totalorder %s16, 0
      %p36 = por %p34, %p35
      %p37 = scmp.ne.s32.totalorder %s26, %s29
      %p38 = scmp.eq.s32.totalorder %s21, 1
      %p39 = por %p37, %p38
      %p40 = scmp.ne.s32.totalorder %s29, %s30
      %p41 = scmp.eq.s32.totalorder %s21, 0
      %p42 = por %p40, %p41
      %p43 = scmp.ne.s32.totalorder %s29, %s30
      %p44 = scmp.eq.s32.totalorder %s22, 1
      %p45 = por %p43, %p44
      %p47 = scmp.ne.s32.totalorder %s30, %s46
      %p48 = scmp.eq.s32.totalorder %s22, 0
      %p49 = por %p47, %p48
      %s51 = sadd.s32 %s50, 1
      %p54 = scmp.eq.s32.totalorder %s16, 1
      %p55 = scmp.ne.s32.totalorder %s50, %s52
      %p56 = scmp.eq.s32.totalorder %s16, 0
      %p57 = por %p55, %p56
      %p58 = scmp.ne.s32.totalorder %s50, %s52
      %p59 = scmp.eq.s32.totalorder %s21, 1
      %p60 = por %p58, %p59
      %p61 = scmp.ne.s32.totalorder %s52, %s53
      %p62 = scmp.eq.s32.totalorder %s21, 0
      %p63 = por %p61, %p62
      %p64 = scmp.ne.s32.totalorder %s52, %s53
      %p65 = scmp.eq.s32.totalorder %s22, 1
      %p66 = por %p64, %p65
      %p68 = scmp.ne.s32.totalorder %s53, %s67
      %p69 = scmp.eq.s32.totalorder %s22, 0
      %p70 = por %p68, %p69
      %s72 = sadd.s32 %s71, 1
      %p75 = scmp.eq.s32.totalorder %s16, 1
      %p76 = scmp.ne.s32.totalorder %s71, %s73
      %p77 = scmp.eq.s32.totalorder %s16, 0
      %p78 = por %p76, %p77
      %p79 = scmp.ne.s32.totalorder %s71, %s73
      %p80 = scmp.eq.s32.totalorder %s21, 1
      %p81 = por %p79, %p80
      %p82 = scmp.ne.s32.totalorder %s73, %s74
      %p83 = scmp.eq.s32.totalorder %s21, 0
      %p84 = por %p82, %p83
      %p85 = scmp.ne.s32.totalorder %s73, %s74
      %p86 = scmp.eq.s32.totalorder %s22, 1
      %p87 = por %p85, %p86
      %p89 = scmp.ne.s32.totalorder %s74, %s88
      %p90 = scmp.eq.s32.totalorder %s22, 0
      %p91 = por %p89, %p90
      %s92 = ssub.s32 %s16, %s23
      %p93 = scmp.eq.s32.totalorder %s92, 0
      %s95 = sadd.s32 %s94, 1
      %s96 = scalar_select %p93, %s94, %s95
      %p99 = pneg %p93
      %p100 = scmp.eq.s32.totalorder %s16, 1
      %p101 = por %p99, %p100
      %p102 = scmp.ne.s32.totalorder %s94, %s97
      %p103 = scmp.eq.s32.totalorder %s16, 0
      %p104 = por %p102, %p103
      %p105 = scmp.ne.s32.totalorder %s94, %s97
      %p106 = scmp.eq.s32.totalorder %s21, 1
      %p107 = por %p105, %p106
      %p108 = scmp.ne.s32.totalorder %s97, %s98
      %p109 = scmp.eq.s32.totalorder %s21, 0
      %p110 = por %p108, %p109
      %p111 = scmp.ne.s32.totalorder %s97, %s98
      %p112 = scmp.eq.s32.totalorder %s22, 1
      %p113 = por %p111, %p112
      %p115 = scmp.ne.s32.totalorder %s98, %s114
      %p116 = scmp.eq.s32.totalorder %s22, 0
      %p117 = por %p115, %p116
      %p118 = scmp.le.s32.totalorder 1, %s16
      %p119 = scmp.lt.s32.totalorder %s16, 3
      %p120 = pnand %p118, %p119
      %p121 = pneg %p120
      // Predicated region
      $region9: #{tpu_custom_call.1} parent=5 // pred_check
        _
      $region10: #{tpu_custom_call.1} parent=5 // pred_check_branch
        %123 = sbr.rel (%p120) target = $region12
      $region11: #{tpu_custom_call.1} parent=5 // pred_region
        %s124 = ssub.s32 %s16, 1
        // Predicated region
        $region13: #{tpu_custom_call.1} parent=11 // pred_check
          %p125 = pneg %p63
        $region14: #{tpu_custom_call.1} parent=11 // pred_check_branch
          %127 = sbr.rel (%p125) target = $region16
        $region15: #{tpu_custom_call.1} parent=11 // pred_region
          %129 = vsyncadd [#allocation6], 0
          %s130 = sshll.u32 %s1, 4
          %s131 = int_to_ptr.hbm [resolvable:$true] %s130
          %s132 = sshll.u32 [#allocation5], 4
          %s133 = int_to_ptr.vmem [resolvable:$true] %s132
          %138 = dma.hbm_to_vmem [thread:$0]  %s131, 1024, %s133, [#allocation6], 128, 128, 8
        $region16: #{tpu_custom_call.1} parent=11 // pred_fallthru
          _
        // Predicated region
        $region17: #{tpu_custom_call.1} parent=11 // pred_check
          %p139 = pneg %p84
        $region18: #{tpu_custom_call.1} parent=11 // pred_check_branch
          %141 = sbr.rel (%p139) target = $region20
        $region19: #{tpu_custom_call.1} parent=11 // pred_region
          _
        $region20: #{tpu_custom_call.1} parent=11 // pred_fallthru
          _
      $region12: #{tpu_custom_call.1} parent=5 // pred_fallthru
        _
      %p142 = scmp.lt.s32.totalorder %s16, 2
      // Predicated region
      $region21: #{tpu_custom_call.1} parent=5 // pred_check
        %p143 = pneg %p142
      $region22: #{tpu_custom_call.1} parent=5 // pred_check_branch
        %145 = sbr.rel (%p143) target = $region24
      $region23: #{tpu_custom_call.1} parent=5 // pred_region
        // Predicated region
        $region25: #{tpu_custom_call.1} parent=23 // pred_check
          %p146 = pneg %p36
        $region26: #{tpu_custom_call.1} parent=23 // pred_check_branch
          %148 = sbr.rel (%p146) target = $region28
        $region27: #{tpu_custom_call.1} parent=23 // pred_region
          %s149 = sand.u32 %s26, 1
          %s150 = scalar_lea.sflag [#allocation3], %s149
          %s151 = sand.u32 %s26, 1
          %s152 = smul.addr %s151, 1024
          %s153 = scalar_lea.vmem [#allocation2], %s152
          %s154 = smul.u32 8, %s16
          %156 = vsyncadd %s150, 0
          %s157 = smul.addr %s154, 16
          %s158 = smul.addr %s157, 8
          %s159 = scalar_lea.hbm %s0, %s158
          %s160 = sshll.u32 %s159, 4
          %s161 = int_to_ptr.hbm [resolvable:$true] %s160
          %s162 = sshll.u32 %s153, 4
          %s163 = int_to_ptr.vmem [resolvable:$true] %s162
          %168 = dma.hbm_to_vmem [thread:$0]  %s161, 16384, %s163, %s150, 256, 256, 16
        $region28: #{tpu_custom_call.1} parent=23 // pred_fallthru
          _
      $region24: #{tpu_custom_call.1} parent=5 // pred_fallthru
        _
      %p169 = scmp.le.s32.totalorder 1, %s16
      %p170 = scmp.lt.s32.totalorder %s16, 3
      %p171 = pnand %p169, %p170
      %p172 = pneg %p171
      // Predicated region
      $region29: #{tpu_custom_call.1} parent=5 // pred_check
        _
      $region30: #{tpu_custom_call.1} parent=5 // pred_check_branch
        %174 = sbr.rel (%p171) target = $region32
      $region31: #{tpu_custom_call.1} parent=5 // pred_region
        %s175 = ssub.s32 %s16, 1
        %s176 = sand.u32 %s29, 1
        %s177 = scalar_lea.sflag [#allocation3], %s176
        %s178 = sand.u32 %s29, 1
        %s179 = smul.addr %s178, 1024
        %s180 = scalar_lea.vmem [#allocation2], %s179
        // Predicated region
        $region33: #{tpu_custom_call.1} parent=31 // pred_check
          %p181 = pneg %p42
        $region34: #{tpu_custom_call.1} parent=31 // pred_check_branch
          %183 = sbr.rel (%p181) target = $region36
        $region35: #{tpu_custom_call.1} parent=31 // pred_region
          %185 = dma.done %s177, 16384
        $region36: #{tpu_custom_call.1} parent=31 // pred_fallthru
          _
        // Predicated region
        $region37: #{tpu_custom_call.1} parent=31 // pred_check
          %p186 = pneg %p63
        $region38: #{tpu_custom_call.1} parent=31 // pred_check_branch
          %188 = sbr.rel (%p186) target = $region40
        $region39: #{tpu_custom_call.1} parent=31 // pred_region
          %190 = dma.done [#allocation6], 1024
        $region40: #{tpu_custom_call.1} parent=31 // pred_fallthru
          _
        %s191 = sand.u32 %s29, 1
        %s192 = scalar_lea.sflag [#allocation3], %s191
        %s193 = sand.u32 %s29, 1
        %s194 = smul.addr %s193, 1024
        %s195 = scalar_lea.vmem [#allocation2], %s194
        %p196 = pneg %p42
        %p197 = pneg %p39
        %p198 = pneg %p63
        %p199 = pneg %p60
        %p200 = pneg %p84
        %p201 = pneg %p81
        %p202 = pneg %p110
        %p203 = pneg %p107
        %s204 = sand.u32 %s97, 1
        %s205 = scalar_lea.sflag [#allocation4], %s204
        %s206 = sand.u32 %s97, 1
        %s207 = smul.addr %s206, 8
        %s208 = scalar_lea.vmem [#allocation7], %s207
        %s209 = smul.u32 8, %s21
        %v210 = vld [vmem:[%s180] sm:$0xff]
        %v211 = vld [vmem:[%s180 + $0x8] sm:$0xff]
        %v212 = vld [vmem:[%s180 + $0x10] sm:$0xff]
        %v213 = vld [vmem:[%s180 + $0x18] sm:$0xff]
        %v214 = vld [vmem:[%s180 + $0x20] sm:$0xff]
        %v215 = vld [vmem:[%s180 + $0x28] sm:$0xff]
        %v216 = vld [vmem:[%s180 + $0x30] sm:$0xff]
        %v217 = vld [vmem:[%s180 + $0x38] sm:$0xff]
        %v218 = vld [vmem:[%s180 + $0x40] sm:$0xff]
        %v219 = vld [vmem:[%s180 + $0x48] sm:$0xff]
        %v220 = vld [vmem:[%s180 + $0x50] sm:$0xff]
        %v221 = vld [vmem:[%s180 + $0x58] sm:$0xff]
        %v222 = vld [vmem:[%s180 + $0x60] sm:$0xff]
        %v223 = vld [vmem:[%s180 + $0x68] sm:$0xff]
        %v224 = vld [vmem:[%s180 + $0x70] sm:$0xff]
        %v225 = vld [vmem:[%s180 + $0x78] sm:$0xff]
        %v226 = vld [vmem:[%s180 + $0x80] sm:$0xff]
        %v227 = vld [vmem:[%s180 + $0x88] sm:$0xff]
        %v228 = vld [vmem:[%s180 + $0x90] sm:$0xff]
        %v229 = vld [vmem:[%s180 + $0x98] sm:$0xff]
        %v230 = vld [vmem:[%s180 + $0xa0] sm:$0xff]
        %v231 = vld [vmem:[%s180 + $0xa8] sm:$0xff]
        %v232 = vld [vmem:[%s180 + $0xb0] sm:$0xff]
        %v233 = vld [vmem:[%s180 + $0xb8] sm:$0xff]
        %v234 = vld [vmem:[%s180 + $0xc0] sm:$0xff]
        %v235 = vld [vmem:[%s180 + $0xc8] sm:$0xff]
        %v236 = vld [vmem:[%s180 + $0xd0] sm:$0xff]
        %v237 = vld [vmem:[%s180 + $0xd8] sm:$0xff]
        %v238 = vld [vmem:[%s180 + $0xe0] sm:$0xff]
        %v239 = vld [vmem:[%s180 + $0xe8] sm:$0xff]
        %v240 = vld [vmem:[%s180 + $0xf0] sm:$0xff]
        %v241 = vld [vmem:[%s180 + $0xf8] sm:$0xff]
        %v242 = vld [vmem:[%s180 + $0x100] sm:$0xff]
        %v243 = vld [vmem:[%s180 + $0x108] sm:$0xff]
        %v244 = vld [vmem:[%s180 + $0x110] sm:$0xff]
        %v245 = vld [vmem:[%s180 + $0x118] sm:$0xff]
        %v246 = vld [vmem:[%s180 + $0x120] sm:$0xff]
        %v247 = vld [vmem:[%s180 + $0x128] sm:$0xff]
        %v248 = vld [vmem:[%s180 + $0x130] sm:$0xff]
        %v249 = vld [vmem:[%s180 + $0x138] sm:$0xff]
        %v250 = vld [vmem:[%s180 + $0x140] sm:$0xff]
        %v251 = vld [vmem:[%s180 + $0x148] sm:$0xff]
        %v252 = vld [vmem:[%s180 + $0x150] sm:$0xff]
        %v253 = vld [vmem:[%s180 + $0x158] sm:$0xff]
        %v254 = vld [vmem:[%s180 + $0x160] sm:$0xff]
        %v255 = vld [vmem:[%s180 + $0x168] sm:$0xff]
        %v256 = vld [vmem:[%s180 + $0x170] sm:$0xff]
        %v257 = vld [vmem:[%s180 + $0x178] sm:$0xff]
        %v258 = vld [vmem:[%s180 + $0x180] sm:$0xff]
        %v259 = vld [vmem:[%s180 + $0x188] sm:$0xff]
        %v260 = vld [vmem:[%s180 + $0x190] sm:$0xff]
        %v261 = vld [vmem:[%s180 + $0x198] sm:$0xff]
        %v262 = vld [vmem:[%s180 + $0x1a0] sm:$0xff]
        %v263 = vld [vmem:[%s180 + $0x1a8] sm:$0xff]
        %v264 = vld [vmem:[%s180 + $0x1b0] sm:$0xff]
        %v265 = vld [vmem:[%s180 + $0x1b8] sm:$0xff]
        %v266 = vld [vmem:[%s180 + $0x1c0] sm:$0xff]
        %v267 = vld [vmem:[%s180 + $0x1c8] sm:$0xff]
        %v268 = vld [vmem:[%s180 + $0x1d0] sm:$0xff]
        %v269 = vld [vmem:[%s180 + $0x1d8] sm:$0xff]
        %v270 = vld [vmem:[%s180 + $0x1e0] sm:$0xff]
        %v271 = vld [vmem:[%s180 + $0x1e8] sm:$0xff]
        %v272 = vld [vmem:[%s180 + $0x1f0] sm:$0xff]
        %v273 = vld [vmem:[%s180 + $0x1f8] sm:$0xff]
        %v274 = vld [vmem:[%s180 + $0x200] sm:$0xff]
        %v275 = vld [vmem:[%s180 + $0x208] sm:$0xff]
        %v276 = vld [vmem:[%s180 + $0x210] sm:$0xff]
        %v277 = vld [vmem:[%s180 + $0x218] sm:$0xff]
        %v278 = vld [vmem:[%s180 + $0x220] sm:$0xff]
        %v279 = vld [vmem:[%s180 + $0x228] sm:$0xff]
        %v280 = vld [vmem:[%s180 + $0x230] sm:$0xff]
        %v281 = vld [vmem:[%s180 + $0x238] sm:$0xff]
        %v282 = vld [vmem:[%s180 + $0x240] sm:$0xff]
        %v283 = vld [vmem:[%s180 + $0x248] sm:$0xff]
        %v284 = vld [vmem:[%s180 + $0x250] sm:$0xff]
        %v285 = vld [vmem:[%s180 + $0x258] sm:$0xff]
        %v286 = vld [vmem:[%s180 + $0x260] sm:$0xff]
        %v287 = vld [vmem:[%s180 + $0x268] sm:$0xff]
        %v288 = vld [vmem:[%s180 + $0x270] sm:$0xff]
        %v289 = vld [vmem:[%s180 + $0x278] sm:$0xff]
        %v290 = vld [vmem:[%s180 + $0x280] sm:$0xff]
        %v291 = vld [vmem:[%s180 + $0x288] sm:$0xff]
        %v292 = vld [vmem:[%s180 + $0x290] sm:$0xff]
        %v293 = vld [vmem:[%s180 + $0x298] sm:$0xff]
        %v294 = vld [vmem:[%s180 + $0x2a0] sm:$0xff]
        %v295 = vld [vmem:[%s180 + $0x2a8] sm:$0xff]
        %v296 = vld [vmem:[%s180 + $0x2b0] sm:$0xff]
        %v297 = vld [vmem:[%s180 + $0x2b8] sm:$0xff]
        %v298 = vld [vmem:[%s180 + $0x2c0] sm:$0xff]
        %v299 = vld [vmem:[%s180 + $0x2c8] sm:$0xff]
        %v300 = vld [vmem:[%s180 + $0x2d0] sm:$0xff]
        %v301 = vld [vmem:[%s180 + $0x2d8] sm:$0xff]
        %v302 = vld [vmem:[%s180 + $0x2e0] sm:$0xff]
        %v303 = vld [vmem:[%s180 + $0x2e8] sm:$0xff]
        %v304 = vld [vmem:[%s180 + $0x2f0] sm:$0xff]
        %v305 = vld [vmem:[%s180 + $0x2f8] sm:$0xff]
        %v306 = vld [vmem:[%s180 + $0x300] sm:$0xff]
        %v307 = vld [vmem:[%s180 + $0x308] sm:$0xff]
        %v308 = vld [vmem:[%s180 + $0x310] sm:$0xff]
        %v309 = vld [vmem:[%s180 + $0x318] sm:$0xff]
        %v310 = vld [vmem:[%s180 + $0x320] sm:$0xff]
        %v311 = vld [vmem:[%s180 + $0x328] sm:$0xff]
        %v312 = vld [vmem:[%s180 + $0x330] sm:$0xff]
        %v313 = vld [vmem:[%s180 + $0x338] sm:$0xff]
        %v314 = vld [vmem:[%s180 + $0x340] sm:$0xff]
        %v315 = vld [vmem:[%s180 + $0x348] sm:$0xff]
        %v316 = vld [vmem:[%s180 + $0x350] sm:$0xff]
        %v317 = vld [vmem:[%s180 + $0x358] sm:$0xff]
        %v318 = vld [vmem:[%s180 + $0x360] sm:$0xff]
        %v319 = vld [vmem:[%s180 + $0x368] sm:$0xff]
        %v320 = vld [vmem:[%s180 + $0x370] sm:$0xff]
        %v321 = vld [vmem:[%s180 + $0x378] sm:$0xff]
        %v322 = vld [vmem:[%s180 + $0x380] sm:$0xff]
        %v323 = vld [vmem:[%s180 + $0x388] sm:$0xff]
        %v324 = vld [vmem:[%s180 + $0x390] sm:$0xff]
        %v325 = vld [vmem:[%s180 + $0x398] sm:$0xff]
        %v326 = vld [vmem:[%s180 + $0x3a0] sm:$0xff]
        %v327 = vld [vmem:[%s180 + $0x3a8] sm:$0xff]
        %v328 = vld [vmem:[%s180 + $0x3b0] sm:$0xff]
        %v329 = vld [vmem:[%s180 + $0x3b8] sm:$0xff]
        %v330 = vld [vmem:[%s180 + $0x3c0] sm:$0xff]
        %v331 = vld [vmem:[%s180 + $0x3c8] sm:$0xff]
        %v332 = vld [vmem:[%s180 + $0x3d0] sm:$0xff]
        %v333 = vld [vmem:[%s180 + $0x3d8] sm:$0xff]
        %v334 = vld [vmem:[%s180 + $0x3e0] sm:$0xff]
        %v335 = vld [vmem:[%s180 + $0x3e8] sm:$0xff]
        %v336 = vld [vmem:[%s180 + $0x3f0] sm:$0xff]
        %v337 = vld [vmem:[%s180 + $0x3f8] sm:$0xff]
        %v338 = vadd.f32 %v210, %v211
        %339 = vadd.xlane.f32.xlu0 %v338
        %v340 = vpop.xlane.xlu0 %339
        %v341 = vadd.f32 %v212, %v213
        %342 = vadd.xlane.f32.xlu0 %v341
        %v343 = vpop.xlane.xlu0 %342
        %v344 = vadd.f32 %v214, %v215
        %345 = vadd.xlane.f32.xlu0 %v344
        %v346 = vpop.xlane.xlu0 %345
        %v347 = vadd.f32 %v216, %v217
        %348 = vadd.xlane.f32.xlu0 %v347
        %v349 = vpop.xlane.xlu0 %348
        %v350 = vadd.f32 %v218, %v219
        %351 = vadd.xlane.f32.xlu0 %v350
        %v352 = vpop.xlane.xlu0 %351
        %v353 = vadd.f32 %v220, %v221
        %354 = vadd.xlane.f32.xlu0 %v353
        %v355 = vpop.xlane.xlu0 %354
        %v356 = vadd.f32 %v222, %v223
        %357 = vadd.xlane.f32.xlu0 %v356
        %v358 = vpop.xlane.xlu0 %357
        %v359 = vadd.f32 %v224, %v225
        %360 = vadd.xlane.f32.xlu0 %v359
        %v361 = vpop.xlane.xlu0 %360
        %v362 = vadd.f32 %v226, %v227
        %363 = vadd.xlane.f32.xlu0 %v362
        %v364 = vpop.xlane.xlu0 %363
        %v365 = vadd.f32 %v228, %v229
        %366 = vadd.xlane.f32.xlu0 %v365
        %v367 = vpop.xlane.xlu0 %366
        %v368 = vadd.f32 %v230, %v231
        %369 = vadd.xlane.f32.xlu0 %v368
        %v370 = vpop.xlane.xlu0 %369
        %v371 = vadd.f32 %v232, %v233
        %372 = vadd.xlane.f32.xlu0 %v371
        %v373 = vpop.xlane.xlu0 %372
        %v374 = vadd.f32 %v234, %v235
        %375 = vadd.xlane.f32.xlu0 %v374
        %v376 = vpop.xlane.xlu0 %375
        %v377 = vadd.f32 %v236, %v237
        %378 = vadd.xlane.f32.xlu0 %v377
        %v379 = vpop.xlane.xlu0 %378
        %v380 = vadd.f32 %v238, %v239
        %381 = vadd.xlane.f32.xlu0 %v380
        %v382 = vpop.xlane.xlu0 %381
        %v383 = vadd.f32 %v240, %v241
        %384 = vadd.xlane.f32.xlu0 %v383
        %v385 = vpop.xlane.xlu0 %384
        %v386 = vadd.f32 %v242, %v243
        %387 = vadd.xlane.f32.xlu0 %v386
        %v388 = vpop.xlane.xlu0 %387
        %v389 = vadd.f32 %v244, %v245
        %390 = vadd.xlane.f32.xlu0 %v389
        %v391 = vpop.xlane.xlu0 %390
        %v392 = vadd.f32 %v246, %v247
        %393 = vadd.xlane.f32.xlu0 %v392
        %v394 = vpop.xlane.xlu0 %393
        %v395 = vadd.f32 %v248, %v249
        %396 = vadd.xlane.f32.xlu0 %v395
        %v397 = vpop.xlane.xlu0 %396
        %v398 = vadd.f32 %v250, %v251
        %399 = vadd.xlane.f32.xlu0 %v398
        %v400 = vpop.xlane.xlu0 %399
        %v401 = vadd.f32 %v252, %v253
        %402 = vadd.xlane.f32.xlu0 %v401
        %v403 = vpop.xlane.xlu0 %402
        %v404 = vadd.f32 %v254, %v255
        %405 = vadd.xlane.f32.xlu0 %v404
        %v406 = vpop.xlane.xlu0 %405
        %v407 = vadd.f32 %v256, %v257
        %408 = vadd.xlane.f32.xlu0 %v407
        %v409 = vpop.xlane.xlu0 %408
        %v410 = vadd.f32 %v258, %v259
        %411 = vadd.xlane.f32.xlu0 %v410
        %v412 = vpop.xlane.xlu0 %411
        %v413 = vadd.f32 %v260, %v261
        %414 = vadd.xlane.f32.xlu0 %v413
        %v415 = vpop.xlane.xlu0 %414
        %v416 = vadd.f32 %v262, %v263
        %417 = vadd.xlane.f32.xlu0 %v416
        %v418 = vpop.xlane.xlu0 %417
        %v419 = vadd.f32 %v264, %v265
        %420 = vadd.xlane.f32.xlu0 %v419
        %v421 = vpop.xlane.xlu0 %420
        %v422 = vadd.f32 %v266, %v267
        %423 = vadd.xlane.f32.xlu0 %v422
        %v424 = vpop.xlane.xlu0 %423
        %v425 = vadd.f32 %v268, %v269
        %426 = vadd.xlane.f32.xlu0 %v425
        %v427 = vpop.xlane.xlu0 %426
        %v428 = vadd.f32 %v270, %v271
        %429 = vadd.xlane.f32.xlu0 %v428
        %v430 = vpop.xlane.xlu0 %429
        %v431 = vadd.f32 %v272, %v273
        %432 = vadd.xlane.f32.xlu0 %v431
        %v433 = vpop.xlane.xlu0 %432
        %v434 = vadd.f32 %v274, %v275
        %435 = vadd.xlane.f32.xlu0 %v434
        %v436 = vpop.xlane.xlu0 %435
        %v437 = vadd.f32 %v276, %v277
        %438 = vadd.xlane.f32.xlu0 %v437
        %v439 = vpop.xlane.xlu0 %438
        %v440 = vadd.f32 %v278, %v279
        %441 = vadd.xlane.f32.xlu0 %v440
        %v442 = vpop.xlane.xlu0 %441
        %v443 = vadd.f32 %v280, %v281
        %444 = vadd.xlane.f32.xlu0 %v443
        %v445 = vpop.xlane.xlu0 %444
        %v446 = vadd.f32 %v282, %v283
        %447 = vadd.xlane.f32.xlu0 %v446
        %v448 = vpop.xlane.xlu0 %447
        %v449 = vadd.f32 %v284, %v285
        %450 = vadd.xlane.f32.xlu0 %v449
        %v451 = vpop.xlane.xlu0 %450
        %v452 = vadd.f32 %v286, %v287
        %453 = vadd.xlane.f32.xlu0 %v452
        %v454 = vpop.xlane.xlu0 %453
        %v455 = vadd.f32 %v288, %v289
        %456 = vadd.xlane.f32.xlu0 %v455
        %v457 = vpop.xlane.xlu0 %456
        %v458 = vadd.f32 %v290, %v291
        %459 = vadd.xlane.f32.xlu0 %v458
        %v460 = vpop.xlane.xlu0 %459
        %v461 = vadd.f32 %v292, %v293
        %462 = vadd.xlane.f32.xlu0 %v461
        %v463 = vpop.xlane.xlu0 %462
        %v464 = vadd.f32 %v294, %v295
        %465 = vadd.xlane.f32.xlu0 %v464
        %v466 = vpop.xlane.xlu0 %465
        %v467 = vadd.f32 %v296, %v297
        %468 = vadd.xlane.f32.xlu0 %v467
        %v469 = vpop.xlane.xlu0 %468
        %v470 = vadd.f32 %v298, %v299
        %471 = vadd.xlane.f32.xlu0 %v470
        %v472 = vpop.xlane.xlu0 %471
        %v473 = vadd.f32 %v300, %v301
        %474 = vadd.xlane.f32.xlu0 %v473
        %v475 = vpop.xlane.xlu0 %474
        %v476 = vadd.f32 %v302, %v303
        %477 = vadd.xlane.f32.xlu0 %v476
        %v478 = vpop.xlane.xlu0 %477
        %v479 = vadd.f32 %v304, %v305
        %480 = vadd.xlane.f32.xlu0 %v479
        %v481 = vpop.xlane.xlu0 %480
        %v482 = vadd.f32 %v306, %v307
        %483 = vadd.xlane.f32.xlu0 %v482
        %v484 = vpop.xlane.xlu0 %483
        %v485 = vadd.f32 %v308, %v309
        %486 = vadd.xlane.f32.xlu0 %v485
        %v487 = vpop.xlane.xlu0 %486
        %v488 = vadd.f32 %v310, %v311
        %489 = vadd.xlane.f32.xlu0 %v488
        %v490 = vpop.xlane.xlu0 %489
        %v491 = vadd.f32 %v312, %v313
        %492 = vadd.xlane.f32.xlu0 %v491
        %v493 = vpop.xlane.xlu0 %492
        %v494 = vadd.f32 %v314, %v315
        %495 = vadd.xlane.f32.xlu0 %v494
        %v496 = vpop.xlane.xlu0 %495
        %v497 = vadd.f32 %v316, %v317
        %498 = vadd.xlane.f32.xlu0 %v497
        %v499 = vpop.xlane.xlu0 %498
        %v500 = vadd.f32 %v318, %v319
        %501 = vadd.xlane.f32.xlu0 %v500
        %v502 = vpop.xlane.xlu0 %501
        %v503 = vadd.f32 %v320, %v321
        %504 = vadd.xlane.f32.xlu0 %v503
        %v505 = vpop.xlane.xlu0 %504
        %v506 = vadd.f32 %v322, %v323
        %507 = vadd.xlane.f32.xlu0 %v506
        %v508 = vpop.xlane.xlu0 %507
        %v509 = vadd.f32 %v324, %v325
        %510 = vadd.xlane.f32.xlu0 %v509
        %v511 = vpop.xlane.xlu0 %510
        %v512 = vadd.f32 %v326, %v327
        %513 = vadd.xlane.f32.xlu0 %v512
        %v514 = vpop.xlane.xlu0 %513
        %v515 = vadd.f32 %v328, %v329
        %516 = vadd.xlane.f32.xlu0 %v515
        %v517 = vpop.xlane.xlu0 %516
        %v518 = vadd.f32 %v330, %v331
        %519 = vadd.xlane.f32.xlu0 %v518
        %v520 = vpop.xlane.xlu0 %519
        %v521 = vadd.f32 %v332, %v333
        %522 = vadd.xlane.f32.xlu0 %v521
        %v523 = vpop.xlane.xlu0 %522
        %v524 = vadd.f32 %v334, %v335
        %525 = vadd.xlane.f32.xlu0 %v524
        %v526 = vpop.xlane.xlu0 %525
        %v527 = vadd.f32 %v336, %v337
        %528 = vadd.xlane.f32.xlu0 %v527
        %v529 = vpop.xlane.xlu0 %528
        %v530 = vmul.f32 %v340, 0.00390625
        %v531 = vmul.f32 %v343, 0.00390625
        %v532 = vmul.f32 %v346, 0.00390625
        %v533 = vmul.f32 %v349, 0.00390625
        %v534 = vmul.f32 %v352, 0.00390625
        %v535 = vmul.f32 %v355, 0.00390625
        %v536 = vmul.f32 %v358, 0.00390625
        %v537 = vmul.f32 %v361, 0.00390625
        %v538 = vmul.f32 %v364, 0.00390625
        %v539 = vmul.f32 %v367, 0.00390625
        %v540 = vmul.f32 %v370, 0.00390625
        %v541 = vmul.f32 %v373, 0.00390625
        %v542 = vmul.f32 %v376, 0.00390625
        %v543 = vmul.f32 %v379, 0.00390625
        %v544 = vmul.f32 %v382, 0.00390625
        %v545 = vmul.f32 %v385, 0.00390625
        %v546 = vmul.f32 %v388, 0.00390625
        %v547 = vmul.f32 %v391, 0.00390625
        %v548 = vmul.f32 %v394, 0.00390625
        %v549 = vmul.f32 %v397, 0.00390625
        %v550 = vmul.f32 %v400, 0.00390625
        %v551 = vmul.f32 %v403, 0.00390625
        %v552 = vmul.f32 %v406, 0.00390625
        %v553 = vmul.f32 %v409, 0.00390625
        %v554 = vmul.f32 %v412, 0.00390625
        %v555 = vmul.f32 %v415, 0.00390625
        %v556 = vmul.f32 %v418, 0.00390625
        %v557 = vmul.f32 %v421, 0.00390625
        %v558 = vmul.f32 %v424, 0.00390625
        %v559 = vmul.f32 %v427, 0.00390625
        %v560 = vmul.f32 %v430, 0.00390625
        %v561 = vmul.f32 %v433, 0.00390625
        %v562 = vmul.f32 %v436, 0.00390625
        %v563 = vmul.f32 %v439, 0.00390625
        %v564 = vmul.f32 %v442, 0.00390625
        %v565 = vmul.f32 %v445, 0.00390625
        %v566 = vmul.f32 %v448, 0.00390625
        %v567 = vmul.f32 %v451, 0.00390625
        %v568 = vmul.f32 %v454, 0.00390625
        %v569 = vmul.f32 %v457, 0.00390625
        %v570 = vmul.f32 %v460, 0.00390625
        %v571 = vmul.f32 %v463, 0.00390625
        %v572 = vmul.f32 %v466, 0.00390625
        %v573 = vmul.f32 %v469, 0.00390625
        %v574 = vmul.f32 %v472, 0.00390625
        %v575 = vmul.f32 %v475, 0.00390625
        %v576 = vmul.f32 %v478, 0.00390625
        %v577 = vmul.f32 %v481, 0.00390625
        %v578 = vmul.f32 %v484, 0.00390625
        %v579 = vmul.f32 %v487, 0.00390625
        %v580 = vmul.f32 %v490, 0.00390625
        %v581 = vmul.f32 %v493, 0.00390625
        %v582 = vmul.f32 %v496, 0.00390625
        %v583 = vmul.f32 %v499, 0.00390625
        %v584 = vmul.f32 %v502, 0.00390625
        %v585 = vmul.f32 %v505, 0.00390625
        %v586 = vmul.f32 %v508, 0.00390625
        %v587 = vmul.f32 %v511, 0.00390625
        %v588 = vmul.f32 %v514, 0.00390625
        %v589 = vmul.f32 %v517, 0.00390625
        %v590 = vmul.f32 %v520, 0.00390625
        %v591 = vmul.f32 %v523, 0.00390625
        %v592 = vmul.f32 %v526, 0.00390625
        %v593 = vmul.f32 %v529, 0.00390625
        %v594 = vld [vmem:[#allocation5] sm:$0xff]
        %v595 = vld [vmem:[#allocation5 + $0x8] sm:$0xff]
        %v596 = vld [vmem:[#allocation5 + $0x10] sm:$0xff]
        %v597 = vld [vmem:[#allocation5 + $0x18] sm:$0xff]
        %v598 = vld [vmem:[#allocation5 + $0x20] sm:$0xff]
        %v599 = vld [vmem:[#allocation5 + $0x28] sm:$0xff]
        %v600 = vld [vmem:[#allocation5 + $0x30] sm:$0xff]
        %v601 = vld [vmem:[#allocation5 + $0x38] sm:$0xff]
        %v602 = vld [vmem:[%s2] sm:$0x1]
        %v604 = vperm.slane %v602, 0
        %v670 = vlaneseq
        %v671 = vand.u32 %v670, 127
        %v672 = vperm.slane %v530, %v671
        %v673 = vadd.s32 %v671, 4294967288
        %v674 = vperm.slane %v531, %v673
        %vm675 = vcmask 130112
        %v676 = vsel %vm675, %v674, %v672
        %v677 = vadd.s32 %v671, 4294967280
        %v678 = vperm.slane %v532, %v677
        %vm679 = vcmask 195712
        %v680 = vsel %vm679, %v678, %v676
        %v681 = vadd.s32 %v671, 4294967272
        %v682 = vperm.slane %v533, %v681
        %vm683 = vcmask 261312
        %v684 = vsel %vm683, %v682, %v680
        %v685 = vadd.s32 %v671, 4294967264
        %v686 = vperm.slane %v534, %v685
        %vm687 = vcmask 326912
        %v688 = vsel %vm687, %v686, %v684
        %v689 = vadd.s32 %v671, 4294967256
        %v690 = vperm.slane %v535, %v689
        %vm691 = vcmask 392512
        %v692 = vsel %vm691, %v690, %v688
        %v693 = vadd.s32 %v671, 4294967248
        %v694 = vperm.slane %v536, %v693
        %vm695 = vcmask 458112
        %v696 = vsel %vm695, %v694, %v692
        %v697 = vadd.s32 %v671, 4294967240
        %v698 = vperm.slane %v537, %v697
        %vm699 = vcmask 523712
        %v700 = vsel %vm699, %v698, %v696
        %v701 = vperm.slane %v538, %v671
        %v702 = vperm.slane %v539, %v673
        %v703 = vsel %vm675, %v702, %v701
        %v704 = vperm.slane %v540, %v677
        %v705 = vsel %vm679, %v704, %v703
        %v706 = vperm.slane %v541, %v681
        %v707 = vsel %vm683, %v706, %v705
        %v708 = vperm.slane %v542, %v685
        %v709 = vsel %vm687, %v708, %v707
        %v710 = vperm.slane %v543, %v689
        %v711 = vsel %vm691, %v710, %v709
        %v712 = vperm.slane %v544, %v693
        %v713 = vsel %vm695, %v712, %v711
        %v714 = vperm.slane %v545, %v697
        %v715 = vsel %vm699, %v714, %v713
        %v716 = vperm.slane %v546, %v671
        %v717 = vperm.slane %v547, %v673
        %v718 = vsel %vm675, %v717, %v716
        %v719 = vperm.slane %v548, %v677
        %v720 = vsel %vm679, %v719, %v718
        %v721 = vperm.slane %v549, %v681
        %v722 = vsel %vm683, %v721, %v720
        %v723 = vperm.slane %v550, %v685
        %v724 = vsel %vm687, %v723, %v722
        %v725 = vperm.slane %v551, %v689
        %v726 = vsel %vm691, %v725, %v724
        %v727 = vperm.slane %v552, %v693
        %v728 = vsel %vm695, %v727, %v726
        %v729 = vperm.slane %v553, %v697
        %v730 = vsel %vm699, %v729, %v728
        %v731 = vperm.slane %v554, %v671
        %v732 = vperm.slane %v555, %v673
        %v733 = vsel %vm675, %v732, %v731
        %v734 = vperm.slane %v556, %v677
        %v735 = vsel %vm679, %v734, %v733
        %v736 = vperm.slane %v557, %v681
        %v737 = vsel %vm683, %v736, %v735
        %v738 = vperm.slane %v558, %v685
        %v739 = vsel %vm687, %v738, %v737
        %v740 = vperm.slane %v559, %v689
        %v741 = vsel %vm691, %v740, %v739
        %v742 = vperm.slane %v560, %v693
        %v743 = vsel %vm695, %v742, %v741
        %v744 = vperm.slane %v561, %v697
        %v745 = vsel %vm699, %v744, %v743
        %v746 = vperm.slane %v562, %v671
        %v747 = vperm.slane %v563, %v673
        %v748 = vsel %vm675, %v747, %v746
        %v749 = vperm.slane %v564, %v677
        %v750 = vsel %vm679, %v749, %v748
        %v751 = vperm.slane %v565, %v681
        %v752 = vsel %vm683, %v751, %v750
        %v753 = vperm.slane %v566, %v685
        %v754 = vsel %vm687, %v753, %v752
        %v755 = vperm.slane %v567, %v689
        %v756 = vsel %vm691, %v755, %v754
        %v757 = vperm.slane %v568, %v693
        %v758 = vsel %vm695, %v757, %v756
        %v759 = vperm.slane %v569, %v697
        %v760 = vsel %vm699, %v759, %v758
        %v761 = vperm.slane %v570, %v671
        %v762 = vperm.slane %v571, %v673
        %v763 = vsel %vm675, %v762, %v761
        %v764 = vperm.slane %v572, %v677
        %v765 = vsel %vm679, %v764, %v763
        %v766 = vperm.slane %v573, %v681
        %v767 = vsel %vm683, %v766, %v765
        %v768 = vperm.slane %v574, %v685
        %v769 = vsel %vm687, %v768, %v767
        %v770 = vperm.slane %v575, %v689
        %v771 = vsel %vm691, %v770, %v769
        %v772 = vperm.slane %v576, %v693
        %v773 = vsel %vm695, %v772, %v771
        %v774 = vperm.slane %v577, %v697
        %v775 = vsel %vm699, %v774, %v773
        %v776 = vperm.slane %v578, %v671
        %v777 = vperm.slane %v579, %v673
        %v778 = vsel %vm675, %v777, %v776
        %v779 = vperm.slane %v580, %v677
        %v780 = vsel %vm679, %v779, %v778
        %v781 = vperm.slane %v581, %v681
        %v782 = vsel %vm683, %v781, %v780
        %v783 = vperm.slane %v582, %v685
        %v784 = vsel %vm687, %v783, %v782
        %v785 = vperm.slane %v583, %v689
        %v786 = vsel %vm691, %v785, %v784
        %v787 = vperm.slane %v584, %v693
        %v788 = vsel %vm695, %v787, %v786
        %v789 = vperm.slane %v585, %v697
        %v790 = vsel %vm699, %v789, %v788
        %v791 = vperm.slane %v586, %v671
        %v792 = vperm.slane %v587, %v673
        %v793 = vsel %vm675, %v792, %v791
        %v794 = vperm.slane %v588, %v677
        %v795 = vsel %vm679, %v794, %v793
        %v796 = vperm.slane %v589, %v681
        %v797 = vsel %vm683, %v796, %v795
        %v798 = vperm.slane %v590, %v685
        %v799 = vsel %vm687, %v798, %v797
        %v800 = vperm.slane %v591, %v689
        %v801 = vsel %vm691, %v800, %v799
        %v802 = vperm.slane %v592, %v693
        %v803 = vsel %vm695, %v802, %v801
        %v804 = vperm.slane %v593, %v697
        %v805 = vsel %vm699, %v804, %v803
        %vm806 = vcmask 1041409
        %v807 = vsel %vm806, %v715, %v700
        %vm808 = vcmask 1042434
        %v809 = vsel %vm808, %v730, %v807
        %vm810 = vcmask 1043459
        %v811 = vsel %vm810, %v745, %v809
        %vm812 = vcmask 1044484
        %v813 = vsel %vm812, %v760, %v811
        %vm814 = vcmask 1045509
        %v815 = vsel %vm814, %v775, %v813
        %vm816 = vcmask 1046534
        %v817 = vsel %vm816, %v790, %v815
        %vm818 = vcmask 1047559
        %v819 = vsel %vm818, %v805, %v817
        %vm820 = vcmask 523264
        %v821 = vsel %vm820, %v819, 0
        %823 = vmatpush.msra.mxu0 0.0
        %824 = vmatpush.msra.mxu0 0.0
        %825 = vmatpush.msra.mxu0 0.0
        %826 = vmatpush.msra.mxu0 0.0
        %827 = vmatpush.msra.mxu0 0.0
        %828 = vmatpush.msra.mxu0 0.0
        %829 = vmatpush.msra.mxu0 0.0
        %830 = vmatpush.msra.mxu0 0.0
        %831 = vmatpush.msra.mxu0 %v601
        %832 = vmatpush.msra.mxu0 %v600
        %833 = vmatpush.msra.mxu0 %v599
        %834 = vmatpush.msra.mxu0 %v598
        %835 = vmatpush.msra.mxu0 %v597
        %836 = vmatpush.msra.mxu0 %v596
        %837 = vmatpush.msra.mxu0 %v595
        %838 = vmatpush.msra.mxu0 %v594
        %839 = vmatmul.f32.gmra.mxu0 %v821
        %v840 = vpop.f32.mrf.mxu0
        %v841 = vadd.f32 %v604, %v840
        %842 = vdwg.mxu0
        %843 = vst [vmem:[%s208] sm:$0xff] %v841
        %s844 = sand.u32 %s97, 1
        %s845 = scalar_lea.sflag [#allocation4], %s844
        %s846 = sand.u32 %s97, 1
        %s847 = smul.addr %s846, 8
        %s848 = scalar_lea.vmem [#allocation7], %s847
        // Predicated region
        $region41: #{tpu_custom_call.1} parent=31 // pred_check
          %p849 = pneg %p107
        $region42: #{tpu_custom_call.1} parent=31 // pred_check_branch
          %851 = sbr.rel (%p849) target = $region44
        $region43: #{tpu_custom_call.1} parent=31 // pred_region
          %853 = vsyncadd %s845, 0
          %s854 = smul.addr %s21, 8
          %s855 = scalar_lea.hbm %s3, %s854
          %s857 = sshll.u32 %s848, 4
          %s858 = int_to_ptr.vmem [resolvable:$true] %s857
          %s859 = sshll.u32 %s855, 4
          %s860 = int_to_ptr.hbm [resolvable:$true] %s859
          %862 = dma.vmem_to_hbm [thread:$0]  %s858, 128, %s860, %s845
        $region44: #{tpu_custom_call.1} parent=31 // pred_fallthru
          _
      $region32: #{tpu_custom_call.1} parent=5 // pred_fallthru
        _
      %p863 = scmp.le.s32.totalorder 2, %s16
      // Predicated region
      $region45: #{tpu_custom_call.1} parent=5 // pred_check
        %p864 = pneg %p863
      $region46: #{tpu_custom_call.1} parent=5 // pred_check_branch
        %866 = sbr.rel (%p864) target = $region48
      $region47: #{tpu_custom_call.1} parent=5 // pred_region
        %s867 = ssub.s32 %s16, 2
        // Predicated region
        $region49: #{tpu_custom_call.1} parent=47 // pred_check
          %p868 = pneg %p113
        $region50: #{tpu_custom_call.1} parent=47 // pred_check_branch
          %870 = sbr.rel (%p868) target = $region52
        $region51: #{tpu_custom_call.1} parent=47 // pred_region
          %s871 = sand.u32 %s98, 1
          %s872 = scalar_lea.sflag [#allocation4], %s871
          %s873 = sand.u32 %s98, 1
          %s874 = smul.addr %s873, 8
          %s875 = scalar_lea.vmem [#allocation7], %s874
          %877 = dma.done %s872, 128
        $region52: #{tpu_custom_call.1} parent=47 // pred_fallthru
          _
      $region48: #{tpu_custom_call.1} parent=5 // pred_fallthru
        _
    $region6: #{tpu_custom_call.1} parent=1 // loop_footer
      %s20 = sadd.s32 1, %s16
    $region7: #{tpu_custom_call.1} parent=1 // loop_footer_branch
      %15 = sbr.rel target = $region3
    $region8: #{tpu_custom_call.1} parent=1 // loop_exit
      _
    %878 = vsyncpa [#allocation3], 1
    %s879 = scalar_lea.sflag [#allocation3], 1
    %880 = vsyncpa %s879, 1
    %881 = vsyncpa [#allocation6], 1
    %882 = vsyncpa [#allocation4], 1
    %s883 = scalar_lea.sflag [#allocation4], 1
    %884 = vsyncpa %s883, 1

</llo_original>
